<compile_context>
chip_gen: v5e
topology: v5e:2x2
jax: 0.10.0
libtpu: 0.0.40
codegen_flags: <defaults>
</compile_context>

<pallas_src>
import functools

import jax
import jax.numpy as jnp
from jax.experimental import pallas as pl
from jax.experimental.pallas import tpu as pltpu

_LANES = 128
_SUBLANES = 8
_GRANULE = _SUBLANES * _LANES      # 1024: kernel consumes a multiple of this
_SUB_ROWS = 256                    # rows per in-kernel streaming sub-chunk (128 KiB f32)
_MAX_BLOCK_ROWS = 8192             # 8192 x 128 x 4B = 4 MiB f32 per input per grid block


def _dice_bce_partials_kernel(pred_ref, tgt_ref, out_ref, *,
                              sub_rows, grid_blocks, inner_steps,
                              subs_full, subs_last, rows_last, mask_last):
    """Accumulates per-core partial sums [sig*t, sig+t, bce] into out_ref (3,8,128)."""
    c = pl.program_id(0)            # TensorCore-parallel axis
    i = pl.program_id(1)            # sequential streaming axis
    blk = c * inner_steps + i       # logical row-block id

    @pl.when(i == 0)
    def _init():
        out_ref[...] = jnp.zeros_like(out_ref)

    def _fold(q):
        # (k*8, 128) -> (8, 128) using only elementwise vreg adds (no XLU).
        return q.reshape(-1, _SUBLANES, _LANES).sum(axis=0)

    def _process(num_subs, masked):
        def body(j, carry):
            ci, cp, cb = carry
            r0 = pl.multiple_of(j * sub_rows, _SUBLANES)
            x = pred_ref[pl.ds(r0, sub_rows), :].astype(jnp.float32)
            t = tgt_ref[pl.ds(r0, sub_rows), :].astype(jnp.float32)
            # Shared transcendentals: one exp + one divide per element feed both
            # the sigmoid and the stable BCE-with-logits log term.
            e = jnp.exp(-jnp.abs(x))
            inv = 1.0 / (1.0 + e)   # full precision to hold the 2e-5 tolerance;
                                    # pl.reciprocal(1+e, approx=True) is the
                                    # cheaper EUP variant if tolerance allows.
            sig = jnp.where(x >= 0.0, inv, e * inv)              # sigmoid(x)
            bce = jnp.maximum(x, 0.0) - x * t + jnp.log1p(e)     # stable BCE
            if masked:
                # Only the last logical block can see undefined rows.  Mask with
                # a small row-index compare (select, not multiply, so NaN/Inf
                # garbage never propagates; no 32-bit element-index overflow).
                row = r0 + jax.lax.broadcasted_iota(jnp.int32, x.shape, 0)
                valid = row < rows_last
                sig = jnp.where(valid, sig, 0.0)
                t = jnp.where(valid, t, 0.0)
                bce = jnp.where(valid, bce, 0.0)
            return (ci + _fold(sig * t), cp + _fold(sig + t), cb + _fold(bce))

        z = jnp.zeros((_SUBLANES, _LANES), jnp.float32)
        ci, cp, cb = jax.lax.fori_loop(0, num_subs, body, (z, z, z))
        out_ref[0, :, :] += ci
        out_ref[1, :, :] += cp
        out_ref[2, :, :] += cb

    @pl.when(blk < grid_blocks - 1)
    def _fast():
        _process(subs_full, masked=False)

    @pl.when(blk == grid_blocks - 1)
    def _last():
        _process(subs_last, masked=mask_last)
    # blk > grid_blocks - 1 only occurs on grid-padding steps (odd block count
    # split over two cores): no accumulation there.


def _partial_sums_jax(x, t):
    """Plain-JAX partial sums for the tiny ragged tail (< 1024 elements)."""
    x = x.astype(jnp.float32)
    t = t.astype(jnp.float32)
    e = jnp.exp(-jnp.abs(x))
    inv = 1.0 / (1.0 + e)
    sig = jnp.where(x >= 0.0, inv, e * inv)
    bce = jnp.maximum(x, 0.0) - x * t + jnp.log1p(e)
    return jnp.sum(sig * t), jnp.sum(sig + t), jnp.sum(bce)


def dice_bce_loss(pred, target, lambda_dice=1.0, lambda_bce=1.0):
    """Pallas implementation of DiceBCELoss.forward(pred, target) -> scalar f32."""
    assert pred.shape == target.shape
    n = int(pred.size)

    flat_p = pred.reshape(-1)
    flat_t = target.reshape(-1)

    # Main slab: largest prefix that is a multiple of 1024 elements.  The 2-D
    # reshape below is a pure bitcast — no jnp.pad / full-array copy is made.
    n_main = (n // _GRANULE) * _GRANULE
    rows = n_main // _LANES                         # always a multiple of 8

    inter = jnp.float32(0.0)
    pt = jnp.float32(0.0)
    bsum = jnp.float32(0.0)

    if rows > 0:
        if n_main == n:
            main_p, main_t = flat_p, flat_t         # zero-copy path (bitcast only)
        else:
            # Ragged input: slice off only the main prefix; the <=1023-element
            # tail is handled in plain JAX below (no padding of both tensors).
            main_p, main_t = flat_p[:n_main], flat_t[:n_main]
        p2 = main_p.reshape(rows, _LANES)
        t2 = main_t.reshape(rows, _LANES)

        if rows >= _SUB_ROWS:
            sub_rows = _SUB_ROWS
            block_rows = min(_MAX_BLOCK_ROWS, (rows // _SUB_ROWS) * _SUB_ROWS)
        else:
            sub_rows = rows
            block_rows = rows
        grid_blocks = -(-rows // block_rows)
        rows_last = rows - (grid_blocks - 1) * block_rows
        subs_full = block_rows // sub_rows
        subs_last = -(-rows_last // sub_rows)
        mask_last = rows_last < subs_last * sub_rows

        # Leading "parallel" axis -> both TensorCores on v7x; serial on v5e/v6e.
        n_cores = 2 if grid_blocks >= 2 else 1
        inner_steps = -(-grid_blocks // n_cores)

        if n_cores * inner_steps == grid_blocks:
            in_map = lambda c, i: (c * inner_steps + i, 0)
        else:  # odd block count: clamp the padded step; kernel skips its work.
            in_map = lambda c, i: (jnp.minimum(c * inner_steps + i, grid_blocks - 1), 0)

        kernel = functools.partial(
            _dice_bce_partials_kernel,
            sub_rows=sub_rows, grid_blocks=grid_blocks, inner_steps=inner_steps,
            subs_full=subs_full, subs_last=subs_last, rows_last=rows_last,
            mask_last=mask_last)

        partials = pl.pallas_call(
            kernel,
            out_shape=jax.ShapeDtypeStruct((n_cores * 3, _SUBLANES, _LANES),
                                           jnp.float32),
            grid_spec=pltpu.PrefetchScalarGridSpec(
                num_scalar_prefetch=0,
                grid=(n_cores, inner_steps),
                in_specs=[pl.BlockSpec((block_rows, _LANES), in_map),
                          pl.BlockSpec((block_rows, _LANES), in_map)],
                out_specs=pl.BlockSpec((3, _SUBLANES, _LANES),
                                       lambda c, i: (c, 0, 0)),
            ),
            compiler_params=pltpu.CompilerParams(
                dimension_semantics=("parallel", "arbitrary"),
                vmem_limit_bytes=32 * 1024 * 1024,
            ),
        )(p2, t2)

        partials = partials.reshape(n_cores, 3, _SUBLANES, _LANES)
        inter = jnp.sum(partials[:, 0])
        pt = jnp.sum(partials[:, 1])
        bsum = jnp.sum(partials[:, 2])

    if n_main != n:
        ti, tp, tb = _partial_sums_jax(flat_p[n_main:], flat_t[n_main:])
        inter = inter + ti
        pt = pt + tp
        bsum = bsum + tb

    smooth = jnp.float32(1e-8)                      # matches the supplied module
    dice = 1.0 - (2.0 * inter + smooth) / (pt + smooth)
    bce_mean = bsum / jnp.float32(n)
    return jnp.float32(lambda_dice) * dice + jnp.float32(lambda_bce) * bce_mean


def _reference(pred, target, lambda_dice=1.0, lambda_bce=1.0):
    """Plain-JAX reference mirroring the PyTorch module."""
    smooth = 1e-8
    x = pred.reshape(-1).astype(jnp.float32)
    t = target.reshape(-1).astype(jnp.float32)
    p = jax.nn.sigmoid(x)
    inter = jnp.sum(p * t)
    dice = 1.0 - (2.0 * inter + smooth) / (jnp.sum(p) + jnp.sum(t) + smooth)
    bce = jnp.mean(jnp.maximum(x, 0.0) - x * t + jnp.log1p(jnp.exp(-jnp.abs(x))))
    return lambda_dice * dice + lambda_bce * bce


if __name__ == "__main__":
    key = jax.random.PRNGKey(0)
    k1, k2, k3, k4, k5, k6 = jax.random.split(key, 6)

    # Primary small NCHW case: batch=2, channels=4, spatial=16x16.
    pred = jax.random.normal(k1, (2, 4, 16, 16), dtype=jnp.float32)
    target = (jax.random.uniform(k2, (2, 4, 16, 16)) > 0.5).astype(jnp.float32)
    loss = jax.block_until_ready(dice_bce_loss(pred, target, 1.0, 1.0))
    ref = _reference(pred, target, 1.0, 1.0)
    assert jnp.allclose(loss, ref, atol=2e-5, rtol=2e-5), (loss, ref)

    # Multi-block case: exercises the 2-way core split + masked last block.
    pred2 = jax.random.normal(k3, (2, 3, 100, 128), dtype=jnp.float32)
    target2 = (jax.random.uniform(k4, (2, 3, 100, 128)) > 0.5).astype(jnp.float32)
    loss2 = jax.block_until_ready(dice_bce_loss(pred2, target2, 0.7, 1.3))
    ref2 = _reference(pred2, target2, 0.7, 1.3)
    assert jnp.allclose(loss2, ref2, atol=2e-5, rtol=2e-5), (loss2, ref2)

    # Ragged case (n % 1024 != 0): <1024-element tail handled outside the kernel.
    pred3 = jax.random.normal(k5, (3, 5, 7, 11), dtype=jnp.float32)
    target3 = (jax.random.uniform(k6, (3, 5, 7, 11)) > 0.5).astype(jnp.float32)
    loss3 = jax.block_until_ready(dice_bce_loss(pred3, target3, 1.0, 1.0))
    ref3 = _reference(pred3, target3, 1.0, 1.0)
    assert jnp.allclose(loss3, ref3, atol=2e-5, rtol=2e-5), (loss3, ref3)

    print("KERNEL_OK")
</pallas_src>

<mosaic_0001>
module attributes {stable_mosaic.version = 11 : i64} {
  func.func @_dice_bce_partials_kernel(%arg0: i32, %arg1: i32, %arg2: memref<16x128xf32, #tpu.memory_space<vmem>>, %arg3: memref<16x128xf32, #tpu.memory_space<vmem>>, %arg4: memref<3x8x128xf32, #tpu.memory_space<vmem>>) attributes {dimension_semantics = [#tpu.dimension_semantics<parallel>, #tpu.dimension_semantics<arbitrary>], iteration_bounds = array<i64: 1, 1>, scalar_prefetch = 0 : i64, scratch_operands = 0 : i64, tpu.core_type = #tpu.core_type<tc>, window_params = [{transform_indices = @transform_0, window_bounds = array<i64: 16, 128>}, {transform_indices = @transform_1, window_bounds = array<i64: 16, 128>}, {transform_indices = @transform_2, window_bounds = array<i64: 3, 8, 128>}]} {
    %c1_i32 = arith.constant 1 : i32
    %0 = arith.muli %arg0, %c1_i32 : i32
    %1 = arith.addi %0, %arg1 : i32
    %c0_i32 = arith.constant 0 : i32
    %2 = arith.cmpi eq, %arg1, %c0_i32 : i32
    %3 = arith.extui %2 : i1 to i32
    %c0_i32_0 = arith.constant 0 : i32
    %4 = arith.cmpi ne, %3, %c0_i32_0 : i32
    scf.if %4 {
      %cst = arith.constant 0.000000e+00 : f32
      %11 = vector.broadcast %cst : f32 to vector<3x8x128xf32>
      %c0 = arith.constant 0 : index
      %c0_5 = arith.constant 0 : index
      %c0_6 = arith.constant 0 : index
      %12 = vector.load %arg4[%c0, %c0_5, %c0_6] : memref<3x8x128xf32, #tpu.memory_space<vmem>>, vector<3x8x128xf32>
      tpu.vector_store %arg4[%c0, %c0_5, %c0_6], %11 {strides = array<i32>} : memref<3x8x128xf32, #tpu.memory_space<vmem>>, vector<3x8x128xf32>,
    } else {
    }
    %c0_i32_1 = arith.constant 0 : i32
    %5 = arith.cmpi slt, %1, %c0_i32_1 : i32
    %6 = arith.extui %5 : i1 to i32
    %c0_i32_2 = arith.constant 0 : i32
    %7 = arith.cmpi ne, %6, %c0_i32_2 : i32
    scf.if %7 {
      %cst = arith.constant 0.000000e+00 : f32
      %11 = vector.broadcast %cst : f32 to vector<8x128xf32>
      %c0_i32_5 = arith.constant 0 : i32
      %c16_i32 = arith.constant 16 : i32
      %12 = arith.muli %c0_i32_5, %c16_i32 : i32
      %13 = tpu.assume_multiple %12, 8 : i32
      %14 = arith.index_cast %13 : i32 to index
      %c0 = arith.constant 0 : index
      %15 = vector.load %arg2[%14, %c0] : memref<16x128xf32, #tpu.memory_space<vmem>>, vector<16x128xf32>
      %16 = arith.index_cast %13 : i32 to index
      %c0_6 = arith.constant 0 : index
      %17 = vector.load %arg3[%16, %c0_6] : memref<16x128xf32, #tpu.memory_space<vmem>>, vector<16x128xf32>
      %18 = math.absf %15 : vector<16x128xf32>
      %cst_7 = arith.constant 0.000000e+00 : f32
      %19 = vector.broadcast %cst_7 : f32 to vector<16x128xf32>
      %20 = arith.subf %19, %18 : vector<16x128xf32>
      %21 = math.exp %20 : vector<16x128xf32>
      %cst_8 = arith.constant 1.000000e+00 : f32
      %22 = vector.broadcast %cst_8 : f32 to vector<16x128xf32>
      %23 = arith.addf %22, %21 : vector<16x128xf32>
      %cst_9 = arith.constant 1.000000e+00 : f32
      %24 = vector.broadcast %cst_9 : f32 to vector<16x128xf32>
      %25 = arith.divf %24, %23 : vector<16x128xf32>
      %cst_10 = arith.constant 0.000000e+00 : f32
      %26 = vector.broadcast %cst_10 : f32 to vector<16x128xf32>
      %27 = arith.cmpf oge, %15, %26 : vector<16x128xf32>
      %28 = arith.mulf %21, %25 : vector<16x128xf32>
      %29 = arith.select %27, %25, %28 : vector<16x128xi1>, vector<16x128xf32>
      %cst_11 = arith.constant 0.000000e+00 : f32
      %30 = vector.broadcast %cst_11 : f32 to vector<16x128xf32>
      %31 = arith.maximumf %15, %30 : vector<16x128xf32>
      %32 = arith.mulf %15, %17 : vector<16x128xf32>
      %33 = arith.subf %31, %32 : vector<16x128xf32>
      %34 = math.log1p %21 : vector<16x128xf32>
      %35 = arith.addf %33, %34 : vector<16x128xf32>
      %36 = arith.mulf %29, %17 : vector<16x128xf32>
      %37 = vector.shape_cast %36 : vector<16x128xf32> to vector<2x8x128xf32>
      %cst_12 = arith.constant dense<0.000000e+00> : vector<8x128xf32>
      %38 = vector.multi_reduction <add>, %37, %cst_12 [0] : vector<2x8x128xf32> to vector<8x128xf32>
      %39 = arith.addf %11, %38 : vector<8x128xf32>
      %40 = arith.addf %29, %17 : vector<16x128xf32>
      %41 = vector.shape_cast %40 : vector<16x128xf32> to vector<2x8x128xf32>
      %cst_13 = arith.constant dense<0.000000e+00> : vector<8x128xf32>
      %42 = vector.multi_reduction <add>, %41, %cst_13 [0] : vector<2x8x128xf32> to vector<8x128xf32>
      %43 = arith.addf %11, %42 : vector<8x128xf32>
      %44 = vector.shape_cast %35 : vector<16x128xf32> to vector<2x8x128xf32>
      %cst_14 = arith.constant dense<0.000000e+00> : vector<8x128xf32>
      %45 = vector.multi_reduction <add>, %44, %cst_14 [0] : vector<2x8x128xf32> to vector<8x128xf32>
      %46 = arith.addf %11, %45 : vector<8x128xf32>
      %c1_i32_15 = arith.constant 1 : i32
      %c0_16 = arith.constant 0 : index
      %c0_17 = arith.constant 0 : index
      %c0_18 = arith.constant 0 : index
      %47 = vector.load %arg4[%c0_16, %c0_17, %c0_18] : memref<3x8x128xf32, #tpu.memory_space<vmem>>, vector<1x8x128xf32>
      %48 = vector.shape_cast %47 : vector<1x8x128xf32> to vector<8x128xf32>
      %49 = arith.addf %48, %39 : vector<8x128xf32>
      %c0_19 = arith.constant 0 : index
      %c0_20 = arith.constant 0 : index
      %c0_21 = arith.constant 0 : index
      %50 = vector.load %arg4[%c0_19, %c0_20, %c0_21] : memref<3x8x128xf32, #tpu.memory_space<vmem>>, vector<1x8x128xf32>
      %51 = vector.shape_cast %50 : vector<1x8x128xf32> to vector<8x128xf32>
      %52 = vector.shape_cast %49 : vector<8x128xf32> to vector<1x8x128xf32>
      tpu.vector_store %arg4[%c0_19, %c0_20, %c0_21], %52 {strides = array<i32>} : memref<3x8x128xf32, #tpu.memory_space<vmem>>, vector<1x8x128xf32>,
      %c1 = arith.constant 1 : index
      %c0_22 = arith.constant 0 : index
      %c0_23 = arith.constant 0 : index
      %53 = vector.load %arg4[%c1, %c0_22, %c0_23] : memref<3x8x128xf32, #tpu.memory_space<vmem>>, vector<1x8x128xf32>
      %54 = vector.shape_cast %53 : vector<1x8x128xf32> to vector<8x128xf32>
      %55 = arith.addf %54, %43 : vector<8x128xf32>
      %c1_24 = arith.constant 1 : index
      %c0_25 = arith.constant 0 : index
      %c0_26 = arith.constant 0 : index
      %56 = vector.load %arg4[%c1_24, %c0_25, %c0_26] : memref<3x8x128xf32, #tpu.memory_space<vmem>>, vector<1x8x128xf32>
      %57 = vector.shape_cast %56 : vector<1x8x128xf32> to vector<8x128xf32>
      %58 = vector.shape_cast %55 : vector<8x128xf32> to vector<1x8x128xf32>
      tpu.vector_store %arg4[%c1_24, %c0_25, %c0_26], %58 {strides = array<i32>} : memref<3x8x128xf32, #tpu.memory_space<vmem>>, vector<1x8x128xf32>,
      %c2 = arith.constant 2 : index
      %c0_27 = arith.constant 0 : index
      %c0_28 = arith.constant 0 : index
      %59 = vector.load %arg4[%c2, %c0_27, %c0_28] : memref<3x8x128xf32, #tpu.memory_space<vmem>>, vector<1x8x128xf32>
      %60 = vector.shape_cast %59 : vector<1x8x128xf32> to vector<8x128xf32>
      %61 = arith.addf %60, %46 : vector<8x128xf32>
      %c2_29 = arith.constant 2 : index
      %c0_30 = arith.constant 0 : index
      %c0_31 = arith.constant 0 : index
      %62 = vector.load %arg4[%c2_29, %c0_30, %c0_31] : memref<3x8x128xf32, #tpu.memory_space<vmem>>, vector<1x8x128xf32>
      %63 = vector.shape_cast %62 : vector<1x8x128xf32> to vector<8x128xf32>
      %64 = vector.shape_cast %61 : vector<8x128xf32> to vector<1x8x128xf32>
      tpu.vector_store %arg4[%c2_29, %c0_30, %c0_31], %64 {strides = array<i32>} : memref<3x8x128xf32, #tpu.memory_space<vmem>>, vector<1x8x128xf32>,
    } else {
    }
    %c0_i32_3 = arith.constant 0 : i32
    %8 = arith.cmpi eq, %1, %c0_i32_3 : i32
    %9 = arith.extui %8 : i1 to i32
    %c0_i32_4 = arith.constant 0 : i32
    %10 = arith.cmpi ne, %9, %c0_i32_4 : i32
    scf.if %10 {
      %cst = arith.constant 0.000000e+00 : f32
      %11 = vector.broadcast %cst : f32 to vector<8x128xf32>
      %c0_i32_5 = arith.constant 0 : i32
      %c16_i32 = arith.constant 16 : i32
      %12 = arith.muli %c0_i32_5, %c16_i32 : i32
      %13 = tpu.assume_multiple %12, 8 : i32
      %14 = arith.index_cast %13 : i32 to index
      %c0 = arith.constant 0 : index
      %15 = vector.load %arg2[%14, %c0] : memref<16x128xf32, #tpu.memory_space<vmem>>, vector<16x128xf32>
      %16 = arith.index_cast %13 : i32 to index
      %c0_6 = arith.constant 0 : index
      %17 = vector.load %arg3[%16, %c0_6] : memref<16x128xf32, #tpu.memory_space<vmem>>, vector<16x128xf32>
      %18 = math.absf %15 : vector<16x128xf32>
      %cst_7 = arith.constant 0.000000e+00 : f32
      %19 = vector.broadcast %cst_7 : f32 to vector<16x128xf32>
      %20 = arith.subf %19, %18 : vector<16x128xf32>
      %21 = math.exp %20 : vector<16x128xf32>
      %cst_8 = arith.constant 1.000000e+00 : f32
      %22 = vector.broadcast %cst_8 : f32 to vector<16x128xf32>
      %23 = arith.addf %22, %21 : vector<16x128xf32>
      %cst_9 = arith.constant 1.000000e+00 : f32
      %24 = vector.broadcast %cst_9 : f32 to vector<16x128xf32>
      %25 = arith.divf %24, %23 : vector<16x128xf32>
      %cst_10 = arith.constant 0.000000e+00 : f32
      %26 = vector.broadcast %cst_10 : f32 to vector<16x128xf32>
      %27 = arith.cmpf oge, %15, %26 : vector<16x128xf32>
      %28 = arith.mulf %21, %25 : vector<16x128xf32>
      %29 = arith.select %27, %25, %28 : vector<16x128xi1>, vector<16x128xf32>
      %cst_11 = arith.constant 0.000000e+00 : f32
      %30 = vector.broadcast %cst_11 : f32 to vector<16x128xf32>
      %31 = arith.maximumf %15, %30 : vector<16x128xf32>
      %32 = arith.mulf %15, %17 : vector<16x128xf32>
      %33 = arith.subf %31, %32 : vector<16x128xf32>
      %34 = math.log1p %21 : vector<16x128xf32>
      %35 = arith.addf %33, %34 : vector<16x128xf32>
      %36 = arith.mulf %29, %17 : vector<16x128xf32>
      %37 = vector.shape_cast %36 : vector<16x128xf32> to vector<2x8x128xf32>
      %cst_12 = arith.constant dense<0.000000e+00> : vector<8x128xf32>
      %38 = vector.multi_reduction <add>, %37, %cst_12 [0] : vector<2x8x128xf32> to vector<8x128xf32>
      %39 = arith.addf %11, %38 : vector<8x128xf32>
      %40 = arith.addf %29, %17 : vector<16x128xf32>
      %41 = vector.shape_cast %40 : vector<16x128xf32> to vector<2x8x128xf32>
      %cst_13 = arith.constant dense<0.000000e+00> : vector<8x128xf32>
      %42 = vector.multi_reduction <add>, %41, %cst_13 [0] : vector<2x8x128xf32> to vector<8x128xf32>
      %43 = arith.addf %11, %42 : vector<8x128xf32>
      %44 = vector.shape_cast %35 : vector<16x128xf32> to vector<2x8x128xf32>
      %cst_14 = arith.constant dense<0.000000e+00> : vector<8x128xf32>
      %45 = vector.multi_reduction <add>, %44, %cst_14 [0] : vector<2x8x128xf32> to vector<8x128xf32>
      %46 = arith.addf %11, %45 : vector<8x128xf32>
      %c1_i32_15 = arith.constant 1 : i32
      %c0_16 = arith.constant 0 : index
      %c0_17 = arith.constant 0 : index
      %c0_18 = arith.constant 0 : index
      %47 = vector.load %arg4[%c0_16, %c0_17, %c0_18] : memref<3x8x128xf32, #tpu.memory_space<vmem>>, vector<1x8x128xf32>
      %48 = vector.shape_cast %47 : vector<1x8x128xf32> to vector<8x128xf32>
      %49 = arith.addf %48, %39 : vector<8x128xf32>
      %c0_19 = arith.constant 0 : index
      %c0_20 = arith.constant 0 : index
      %c0_21 = arith.constant 0 : index
      %50 = vector.load %arg4[%c0_19, %c0_20, %c0_21] : memref<3x8x128xf32, #tpu.memory_space<vmem>>, vector<1x8x128xf32>
      %51 = vector.shape_cast %50 : vector<1x8x128xf32> to vector<8x128xf32>
      %52 = vector.shape_cast %49 : vector<8x128xf32> to vector<1x8x128xf32>
      tpu.vector_store %arg4[%c0_19, %c0_20, %c0_21], %52 {strides = array<i32>} : memref<3x8x128xf32, #tpu.memory_space<vmem>>, vector<1x8x128xf32>,
      %c1 = arith.constant 1 : index
      %c0_22 = arith.constant 0 : index
      %c0_23 = arith.constant 0 : index
      %53 = vector.load %arg4[%c1, %c0_22, %c0_23] : memref<3x8x128xf32, #tpu.memory_space<vmem>>, vector<1x8x128xf32>
      %54 = vector.shape_cast %53 : vector<1x8x128xf32> to vector<8x128xf32>
      %55 = arith.addf %54, %43 : vector<8x128xf32>
      %c1_24 = arith.constant 1 : index
      %c0_25 = arith.constant 0 : index
      %c0_26 = arith.constant 0 : index
      %56 = vector.load %arg4[%c1_24, %c0_25, %c0_26] : memref<3x8x128xf32, #tpu.memory_space<vmem>>, vector<1x8x128xf32>
      %57 = vector.shape_cast %56 : vector<1x8x128xf32> to vector<8x128xf32>
      %58 = vector.shape_cast %55 : vector<8x128xf32> to vector<1x8x128xf32>
      tpu.vector_store %arg4[%c1_24, %c0_25, %c0_26], %58 {strides = array<i32>} : memref<3x8x128xf32, #tpu.memory_space<vmem>>, vector<1x8x128xf32>,
      %c2 = arith.constant 2 : index
      %c0_27 = arith.constant 0 : index
      %c0_28 = arith.constant 0 : index
      %59 = vector.load %arg4[%c2, %c0_27, %c0_28] : memref<3x8x128xf32, #tpu.memory_space<vmem>>, vector<1x8x128xf32>
      %60 = vector.shape_cast %59 : vector<1x8x128xf32> to vector<8x128xf32>
      %61 = arith.addf %60, %46 : vector<8x128xf32>
      %c2_29 = arith.constant 2 : index
      %c0_30 = arith.constant 0 : index
      %c0_31 = arith.constant 0 : index
      %62 = vector.load %arg4[%c2_29, %c0_30, %c0_31] : memref<3x8x128xf32, #tpu.memory_space<vmem>>, vector<1x8x128xf32>
      %63 = vector.shape_cast %62 : vector<1x8x128xf32> to vector<8x128xf32>
      %64 = vector.shape_cast %61 : vector<8x128xf32> to vector<1x8x128xf32>
      tpu.vector_store %arg4[%c2_29, %c0_30, %c0_31], %64 {strides = array<i32>} : memref<3x8x128xf32, #tpu.memory_space<vmem>>, vector<1x8x128xf32>,
    } else {
    }
    return
  }
  func.func @transform_0(%arg0: i32, %arg1: i32) -> (i32, i32) {
    %c1_i32 = arith.constant 1 : i32
    %0 = arith.muli %arg0, %c1_i32 : i32
    %1 = arith.addi %0, %arg1 : i32
    %c0_i32 = arith.constant 0 : i32
    %c0_i32_0 = arith.constant 0 : i32
    return %1, %c0_i32 : i32, i32
  }
  func.func @transform_1(%arg0: i32, %arg1: i32) -> (i32, i32) {
    %c1_i32 = arith.constant 1 : i32
    %0 = arith.muli %arg0, %c1_i32 : i32
    %1 = arith.addi %0, %arg1 : i32
    %c0_i32 = arith.constant 0 : i32
    %c0_i32_0 = arith.constant 0 : i32
    return %1, %c0_i32 : i32, i32
  }
  func.func @transform_2(%arg0: i32, %arg1: i32) -> (i32, i32, i32) {
    %c0_i32 = arith.constant 0 : i32
    %c0_i32_0 = arith.constant 0 : i32
    %c0_i32_1 = arith.constant 0 : i32
    return %arg0, %c0_i32, %c0_i32_0 : i32, i32, i32
  }
}

</mosaic_0001>

<llo_original>
// kernel: tpu_custom_call.1
$region0: #{tpu_custom_call.1}
  #allocation0 [shape = 'u32[]', space=smem, size = 0x4, offset = 0x4, fixed_abs, tag = 'smem constant byte address 0x4 - core index']
  #allocation1 [shape = 'u32[72,128]{1,0:T(1,128)}', space=vmem, size = 0x9000, scoped, tag = 'internal scratch']
  %s0 = inlined_call_operand.hbm [shape: f32[16,128], index: 0, kind: input, shape index: {}]
  %s1 = inlined_call_operand.hbm [shape: f32[16,128], index: 1, kind: input, shape index: {}]
  %s2 = inlined_call_operand.hbm [shape: f32[3,8,128], index: 2, kind: output, shape index: {}]
  %s3 = sld [smem:[#allocation0]]
  $region38: #{tpu_custom_call.1} parent=0
    _
  %s5 = ssub.s32 1, %s3
  %s6 = scalar_select 0, %s5, %s3
  $region1: #{tpu_custom_call.1} parent=0
    #allocation2 [shape = 'u8[8192]{0}', space=vmem, size = 0x2000, scoped, tag = 'input window, operand 0, single buffered']
    #allocation3 [shape = 's32[1]{0}', space=sflag, size = 0x4, scoped, tag = 'scoped memory for tpu_custom_call.1']
    #allocation4 [shape = 's32[1]{0}', space=sflag, size = 0x4, scoped, tag = 'scoped memory for tpu_custom_call.1']
    #allocation5 [shape = 'u8[8192]{0}', space=vmem, size = 0x2000, scoped, tag = 'input window, operand 1, single buffered']
    #allocation6 [shape = 's32[1]{0}', space=sflag, size = 0x4, scoped, tag = 'scoped memory for tpu_custom_call.1']
    #allocation7 [shape = 'u8[12288]{0}', space=vmem, size = 0x3000, scoped, tag = 'output window, operand 0, single buffered']
    %7 = vsyncpa [#allocation3], 0
    %8 = vsyncpa [#allocation6], 0
    %9 = vsyncpa [#allocation4], 0
    // Predicated region
    $region2: #{tpu_custom_call.1} parent=1 // pred_check
      _
    $region3: #{tpu_custom_call.1} parent=1 // pred_check_branch
      %11 = sbr.rel (0) target = $region5
    $region4: #{tpu_custom_call.1} parent=1 // pred_region
      %s12 = sadd.s32 0, 0
      %s13 = smul.u32 2, %s12
      %15 = vsyncadd [#allocation3], 0
      %s16 = smul.addr %s13, 8
      %s17 = scalar_lea.hbm %s0, %s16
      %s18 = sshll.u32 %s17, 4
      %s19 = int_to_ptr.hbm [resolvable:$true] %s18
      %s20 = sshll.u32 [#allocation2], 4
      %s21 = int_to_ptr.vmem [resolvable:$true] %s20
      %26 = dma.hbm_to_vmem [thread:$0]  %s19, 256, %s21, [#allocation3], 128, 128, 8
    $region5: #{tpu_custom_call.1} parent=1 // pred_fallthru
      _
    // Predicated region
    $region6: #{tpu_custom_call.1} parent=1 // pred_check
      _
    $region7: #{tpu_custom_call.1} parent=1 // pred_check_branch
      %28 = sbr.rel (0) target = $region9
    $region8: #{tpu_custom_call.1} parent=1 // pred_region
      %s29 = sadd.s32 0, 0
      %s30 = smul.u32 2, %s29
      %32 = vsyncadd [#allocation6], 0
      %s33 = smul.addr %s30, 8
      %s34 = scalar_lea.hbm %s1, %s33
      %s35 = sshll.u32 %s34, 4
      %s36 = int_to_ptr.hbm [resolvable:$true] %s35
      %s37 = sshll.u32 [#allocation5], 4
      %s38 = int_to_ptr.vmem [resolvable:$true] %s37
      %43 = dma.hbm_to_vmem [thread:$0]  %s36, 256, %s38, [#allocation6], 128, 128, 8
    $region9: #{tpu_custom_call.1} parent=1 // pred_fallthru
      _
    // Predicated region
    $region10: #{tpu_custom_call.1} parent=1 // pred_check
      _
    $region11: #{tpu_custom_call.1} parent=1 // pred_check_branch
      %45 = sbr.rel (0) target = $region13
    $region12: #{tpu_custom_call.1} parent=1 // pred_region
      %47 = dma.done [#allocation3], 256
    $region13: #{tpu_custom_call.1} parent=1 // pred_fallthru
      _
    // Predicated region
    $region14: #{tpu_custom_call.1} parent=1 // pred_check
      _
    $region15: #{tpu_custom_call.1} parent=1 // pred_check_branch
      %49 = sbr.rel (0) target = $region17
    $region16: #{tpu_custom_call.1} parent=1 // pred_region
      %51 = dma.done [#allocation6], 256
    $region17: #{tpu_custom_call.1} parent=1 // pred_fallthru
      _
    %s52 = sadd.s32 0, 0
    %s53 = smul.u32 2, %s52
    %s54 = sadd.s32 0, 0
    %s55 = smul.u32 2, %s54
    %s56 = sadd.s32 0, 0
    %p57 = scmp.eq.s32.totalorder 0, 0
    // Predicated region
    $region18: #{tpu_custom_call.1} parent=1 // pred_check
      %p58 = pneg %p57
    $region19: #{tpu_custom_call.1} parent=1 // pred_check_branch
      %60 = sbr.rel (%p58) target = $region21
    $region20: #{tpu_custom_call.1} parent=1 // pred_region
      %61 = vst [vmem:[#allocation7] sm:$0xff] 0.0
      %62 = vst [vmem:[#allocation7 + $0x8] sm:$0xff] 0.0
      %63 = vst [vmem:[#allocation7 + $0x10] sm:$0xff] 0.0
    $region21: #{tpu_custom_call.1} parent=1 // pred_fallthru
      _
    %p64 = scmp.lt.s32.totalorder %s56, 0
    // Predicated region
    $region22: #{tpu_custom_call.1} parent=1 // pred_check
      %p65 = pneg %p64
    $region23: #{tpu_custom_call.1} parent=1 // pred_check_branch
      %67 = sbr.rel (%p65) target = $region25
    $region24: #{tpu_custom_call.1} parent=1 // pred_region
      %v68 = vld [vmem:[#allocation2] sm:$0xff]
      %v69 = vld [vmem:[#allocation2 + $0x8] sm:$0xff]
      %v70 = vld [vmem:[#allocation5] sm:$0xff]
      %v71 = vld [vmem:[#allocation5 + $0x8] sm:$0xff]
      %v72 = vand.u32 2147483647, %v68
      %v73 = vand.u32 2147483647, %v69
      %v74 = vsub.f32 0.0, %v72
      %v75 = vsub.f32 0.0, %v73
      %v76 = vmul.f32 %v74, 1.442695
      %v77 = vpow.pop %v76
      %v78 = vmul.f32 %v75, 1.442695
      %v79 = vpow.pop %v78
      %v80 = vadd.f32 %v77, 1.0
      %v81 = vadd.f32 %v79, 1.0
      %v82 = vrcp.pop %v80
      %v83 = vmul.f32 %v80, %v82
      %v84 = vsub.f32 1.0, %v83
      %v85 = vmul.f32 %v82, %v84
      %v86 = vadd.f32 %v82, %v85
      %vm87 = vweird.f32 %v80
      %vm88 = vweird.f32 %v82
      %vm89 = vmor %vm87, %vm88
      %v90 = vsel %vm89, %v82, %v86
      %v91 = vand.u32 2147483647, %v80
      %vm92 = vcmp.eq.f32.partialorder %v91, 8.507059e+37
      %v93 = vand.u32 %v80, 2147483648
      %v94 = vor.u32 1.1754944e-38, %v93
      %v95 = vsel %vm92, %v94, %v90
      %v96 = vmul.f32 1.0, %v95
      %v97 = vrcp.pop %v81
      %v98 = vmul.f32 %v81, %v97
      %v99 = vsub.f32 1.0, %v98
      %v100 = vmul.f32 %v97, %v99
      %v101 = vadd.f32 %v97, %v100
      %vm102 = vweird.f32 %v81
      %vm103 = vweird.f32 %v97
      %vm104 = vmor %vm102, %vm103
      %v105 = vsel %vm104, %v97, %v101
      %v106 = vand.u32 2147483647, %v81
      %vm107 = vcmp.eq.f32.partialorder %v106, 8.507059e+37
      %v108 = vand.u32 %v81, 2147483648
      %v109 = vor.u32 1.1754944e-38, %v108
      %v110 = vsel %vm107, %v109, %v105
      %v111 = vmul.f32 1.0, %v110
      %vm112 = vcmp.ge.f32.partialorder %v68, 0.0
      %vm113 = vcmp.ge.f32.partialorder %v69, 0.0
      %v114 = vmul.f32 %v77, %v96
      %v115 = vmul.f32 %v79, %v111
      %v116 = vsel %vm112, %v96, %v114
      %v117 = vsel %vm113, %v111, %v115
      %v118 = vmax.f32 %v68, 0.0
      %v119 = vmax.f32 %v69, 0.0
      %v120 = vmul.f32 %v68, %v70
      %v121 = vmul.f32 %v69, %v71
      %v122 = vsub.f32 %v118, %v120
      %v123 = vsub.f32 %v119, %v121
      %v124 = vadd.f32 %v77, 1.0
      %v125 = vlog2.pop %v124
      %v126 = vmul.f32 %v125, 0.6931472
      %v127 = vmul.f32 -0.5, %v77
      %v128 = vadd.f32 %v127, 1.0
      %v129 = vmul.f32 %v128, %v77
      %v130 = vand.u32 2147483647, %v77
      %vm131 = vcmp.lt.f32.partialorder %v130, 0.0004427343
      %v132 = vsel %vm131, %v129, %v126
      %v133 = vadd.f32 %v79, 1.0
      %v134 = vlog2.pop %v133
      %v135 = vmul.f32 %v134, 0.6931472
      %v136 = vmul.f32 -0.5, %v79
      %v137 = vadd.f32 %v136, 1.0
      %v138 = vmul.f32 %v137, %v79
      %v139 = vand.u32 2147483647, %v79
      %vm140 = vcmp.lt.f32.partialorder %v139, 0.0004427343
      %v141 = vsel %vm140, %v138, %v135
      %v142 = vadd.f32 %v122, %v132
      %v143 = vadd.f32 %v123, %v141
      %v144 = vmul.f32 %v116, %v70
      %v145 = vmul.f32 %v117, %v71
      %v146 = vadd.f32 %v144, %v145
      %v147 = vadd.f32 %v146, 0.0
      %v148 = vadd.f32 %v116, %v70
      %v149 = vadd.f32 %v117, %v71
      %v150 = vadd.f32 %v148, %v149
      %v151 = vadd.f32 %v150, 0.0
      %v152 = vadd.f32 %v142, %v143
      %v153 = vadd.f32 %v152, 0.0
      %v154 = vld [vmem:[#allocation7] sm:$0xff]
      %v155 = vadd.f32 %v154, %v147
      %156 = vst [vmem:[#allocation7] sm:$0xff] %v155
      %s157 = scalar_lea.vmem [#allocation7], 8
      %v158 = vld [vmem:[%s157] sm:$0xff]
      %v159 = vadd.f32 %v158, %v151
      %160 = vst [vmem:[%s157] sm:$0xff] %v159
      %s161 = scalar_lea.vmem [#allocation7], 16
      %v162 = vld [vmem:[%s161] sm:$0xff]
      %v163 = vadd.f32 %v162, %v153
      %164 = vst [vmem:[%s161] sm:$0xff] %v163
    $region25: #{tpu_custom_call.1} parent=1 // pred_fallthru
      _
    %p165 = scmp.eq.s32.totalorder %s56, 0
    // Predicated region
    $region26: #{tpu_custom_call.1} parent=1 // pred_check
      %p166 = pneg %p165
    $region27: #{tpu_custom_call.1} parent=1 // pred_check_branch
      %168 = sbr.rel (%p166) target = $region29
    $region28: #{tpu_custom_call.1} parent=1 // pred_region
      %v169 = vld [vmem:[#allocation2] sm:$0xff]
      %v170 = vld [vmem:[#allocation2 + $0x8] sm:$0xff]
      %v171 = vld [vmem:[#allocation5] sm:$0xff]
      %v172 = vld [vmem:[#allocation5 + $0x8] sm:$0xff]
      %v173 = vand.u32 2147483647, %v169
      %v174 = vand.u32 2147483647, %v170
      %v175 = vsub.f32 0.0, %v173
      %v176 = vsub.f32 0.0, %v174
      %v177 = vmul.f32 %v175, 1.442695
      %v178 = vpow.pop %v177
      %v179 = vmul.f32 %v176, 1.442695
      %v180 = vpow.pop %v179
      %v181 = vadd.f32 %v178, 1.0
      %v182 = vadd.f32 %v180, 1.0
      %v183 = vrcp.pop %v181
      %v184 = vmul.f32 %v181, %v183
      %v185 = vsub.f32 1.0, %v184
      %v186 = vmul.f32 %v183, %v185
      %v187 = vadd.f32 %v183, %v186
      %vm188 = vweird.f32 %v181
      %vm189 = vweird.f32 %v183
      %vm190 = vmor %vm188, %vm189
      %v191 = vsel %vm190, %v183, %v187
      %v192 = vand.u32 2147483647, %v181
      %vm193 = vcmp.eq.f32.partialorder %v192, 8.507059e+37
      %v194 = vand.u32 %v181, 2147483648
      %v195 = vor.u32 1.1754944e-38, %v194
      %v196 = vsel %vm193, %v195, %v191
      %v197 = vmul.f32 1.0, %v196
      %v198 = vrcp.pop %v182
      %v199 = vmul.f32 %v182, %v198
      %v200 = vsub.f32 1.0, %v199
      %v201 = vmul.f32 %v198, %v200
      %v202 = vadd.f32 %v198, %v201
      %vm203 = vweird.f32 %v182
      %vm204 = vweird.f32 %v198
      %vm205 = vmor %vm203, %vm204
      %v206 = vsel %vm205, %v198, %v202
      %v207 = vand.u32 2147483647, %v182
      %vm208 = vcmp.eq.f32.partialorder %v207, 8.507059e+37
      %v209 = vand.u32 %v182, 2147483648
      %v210 = vor.u32 1.1754944e-38, %v209
      %v211 = vsel %vm208, %v210, %v206
      %v212 = vmul.f32 1.0, %v211
      %vm213 = vcmp.ge.f32.partialorder %v169, 0.0
      %vm214 = vcmp.ge.f32.partialorder %v170, 0.0
      %v215 = vmul.f32 %v178, %v197
      %v216 = vmul.f32 %v180, %v212
      %v217 = vsel %vm213, %v197, %v215
      %v218 = vsel %vm214, %v212, %v216
      %v219 = vmax.f32 %v169, 0.0
      %v220 = vmax.f32 %v170, 0.0
      %v221 = vmul.f32 %v169, %v171
      %v222 = vmul.f32 %v170, %v172
      %v223 = vsub.f32 %v219, %v221
      %v224 = vsub.f32 %v220, %v222
      %v225 = vadd.f32 %v178, 1.0
      %v226 = vlog2.pop %v225
      %v227 = vmul.f32 %v226, 0.6931472
      %v228 = vmul.f32 -0.5, %v178
      %v229 = vadd.f32 %v228, 1.0
      %v230 = vmul.f32 %v229, %v178
      %v231 = vand.u32 2147483647, %v178
      %vm232 = vcmp.lt.f32.partialorder %v231, 0.0004427343
      %v233 = vsel %vm232, %v230, %v227
      %v234 = vadd.f32 %v180, 1.0
      %v235 = vlog2.pop %v234
      %v236 = vmul.f32 %v235, 0.6931472
      %v237 = vmul.f32 -0.5, %v180
      %v238 = vadd.f32 %v237, 1.0
      %v239 = vmul.f32 %v238, %v180
      %v240 = vand.u32 2147483647, %v180
      %vm241 = vcmp.lt.f32.partialorder %v240, 0.0004427343
      %v242 = vsel %vm241, %v239, %v236
      %v243 = vadd.f32 %v223, %v233
      %v244 = vadd.f32 %v224, %v242
      %v245 = vmul.f32 %v217, %v171
      %v246 = vmul.f32 %v218, %v172
      %v247 = vadd.f32 %v245, %v246
      %v248 = vadd.f32 %v247, 0.0
      %v249 = vadd.f32 %v217, %v171
      %v250 = vadd.f32 %v218, %v172
      %v251 = vadd.f32 %v249, %v250
      %v252 = vadd.f32 %v251, 0.0
      %v253 = vadd.f32 %v243, %v244
      %v254 = vadd.f32 %v253, 0.0
      %v255 = vld [vmem:[#allocation7] sm:$0xff]
      %v256 = vadd.f32 %v255, %v248
      %257 = vst [vmem:[#allocation7] sm:$0xff] %v256
      %s258 = scalar_lea.vmem [#allocation7], 8
      %v259 = vld [vmem:[%s258] sm:$0xff]
      %v260 = vadd.f32 %v259, %v252
      %261 = vst [vmem:[%s258] sm:$0xff] %v260
      %s262 = scalar_lea.vmem [#allocation7], 16
      %v263 = vld [vmem:[%s262] sm:$0xff]
      %v264 = vadd.f32 %v263, %v254
      %265 = vst [vmem:[%s262] sm:$0xff] %v264
    $region29: #{tpu_custom_call.1} parent=1 // pred_fallthru
      _
    // Predicated region
    $region30: #{tpu_custom_call.1} parent=1 // pred_check
      _
    $region31: #{tpu_custom_call.1} parent=1 // pred_check_branch
      %267 = sbr.rel (0) target = $region33
    $region32: #{tpu_custom_call.1} parent=1 // pred_region
      %269 = vsyncadd [#allocation4], 0
      %s270 = sshll.u32 [#allocation7], 4
      %s271 = int_to_ptr.vmem [resolvable:$true] %s270
      %s272 = sshll.u32 %s2, 4
      %s273 = int_to_ptr.hbm [resolvable:$true] %s272
      %278 = dma.vmem_to_hbm [thread:$0]  %s271, 384, %s273, [#allocation4], 128, 128, 8
    $region33: #{tpu_custom_call.1} parent=1 // pred_fallthru
      _
    // Predicated region
    $region34: #{tpu_custom_call.1} parent=1 // pred_check
      _
    $region35: #{tpu_custom_call.1} parent=1 // pred_check_branch
      %280 = sbr.rel (0) target = $region37
    $region36: #{tpu_custom_call.1} parent=1 // pred_region
      %282 = dma.done [#allocation4], 384
    $region37: #{tpu_custom_call.1} parent=1 // pred_fallthru
      _
    %283 = vsyncpa [#allocation3], 1
    %284 = vsyncpa [#allocation6], 1
    %285 = vsyncpa [#allocation4], 1

</llo_original>
